<compile_context>
chip_gen: v6e
topology: v6e:2x2x1
jax: 0.10.0
libtpu: 0.0.40
codegen_flags: <defaults>
</compile_context>

<pallas_src>
import functools

import jax
import jax.numpy as jnp
from jax.experimental import pallas as pl
from jax.experimental.pallas import tpu as pltpu


def _round_up(x, m):
    return ((x + m - 1) // m) * m


def _layernorm_kernel(x_ref, ab_ref, o_ref, *, eps, features):
    """Normalize one (tile_rows, F) block. ab_ref = [gamma; beta], f32."""
    x = x_ref[...].astype(jnp.float32)          # (tile_rows, F)
    ab = ab_ref[...]                            # (2, F), already f32
    a = ab[0:1, :]
    b = ab[1:2, :]

    # Two-pass statistics; no feature padding -> no lane mask needed, exact.
    mean = jnp.sum(x, axis=-1, keepdims=True) * (1.0 / features)
    centered = x - mean
    unbiased = max(features - 1, 1)             # torch.std default: ddof = 1
    var = jnp.sum(centered * centered, axis=-1, keepdims=True) * (1.0 / unbiased)
    std = jnp.sqrt(var)

    # eps added to std (matches the reference module). Reciprocal on the tiny
    # (tile_rows, 1) column, then only multiplies on the full tile.
    inv = pl.reciprocal(std + eps, approx=False)
    o_ref[...] = ((centered * inv) * a + b).astype(o_ref.dtype)


def _vmem_capacity_bytes():
    try:
        info = pltpu.get_tpu_info()
        return int(getattr(info, "vmem_capacity_bytes", 64 << 20))
    except Exception:
        return 64 << 20                         # conservative (v7x per-TC VMEM)


def _choose_tile_rows(rows, features, itemsize, vmem_cap, min_steps=4):
    """Biggest row tile whose pipeline buffers + f32 temps fit comfortably."""
    if rows <= 8:
        return rows                             # full-dim block, single step
    # Per-row VMEM cost of one grid step:
    #   double-buffered input block  : 2 * F * itemsize
    #   double-buffered output block : 2 * F * itemsize
    #   in-kernel f32 temporaries (x_f32, centered, pre-cast out) : ~3 * F * 4
    bytes_per_row = 4 * features * itemsize + 12 * features
    budget = max(vmem_cap // 2 - (4 << 20), 4 << 20)
    t = budget // bytes_per_row
    # Keep >= min_steps grid steps: pipelining + 2-TC sharding on v7x.
    t = min(t, -(-rows // min_steps))
    t = max(8, (t // 8) * 8)                    # multiple of 8 sublanes
    t = min(t, _round_up(rows, 8))
    return int(t)


def layer_norm(x, a_2, b_2, eps=1e-6, tile_rows=None):
    """x: [..., F]; a_2, b_2: [F]. Returns same shape/dtype as x."""
    orig_shape = x.shape
    features = int(orig_shape[-1])
    rows = 1
    for d in orig_shape[:-1]:
        rows *= int(d)

    x2 = x.reshape(rows, features)              # contiguous reshape: free
    itemsize = jnp.dtype(x.dtype).itemsize
    vmem_cap = _vmem_capacity_bytes()

    if tile_rows is None:
        tile_rows = _choose_tile_rows(rows, features, itemsize, vmem_cap)
    tile_rows = int(tile_rows)

    grid = (pl.cdiv(rows, tile_rows),)          # ragged last block masked by Pallas

    # gamma/beta: cast to f32 once, pack into one (2, F) resident array.
    ab = jnp.stack([a_2.astype(jnp.float32), b_2.astype(jnp.float32)], axis=0)

    # VMEM budget: double-buffered in/out blocks + f32 in-kernel temporaries
    # + gamma/beta + headroom, clamped to what the chip actually has.
    block_in = tile_rows * features * itemsize
    temps = 3 * tile_rows * features * 4
    needed = 4 * block_in + temps + 2 * features * 4 + (2 << 20)
    vmem_limit = int(min(max(needed, 32 << 20), vmem_cap * 3 // 4))

    kernel = functools.partial(_layernorm_kernel, eps=float(eps), features=features)

    out = pl.pallas_call(
        kernel,
        out_shape=jax.ShapeDtypeStruct((rows, features), x.dtype),
        grid_spec=pltpu.PrefetchScalarGridSpec(
            num_scalar_prefetch=0,
            grid=grid,
            in_specs=[
                pl.BlockSpec((tile_rows, features), lambda i: (i, 0)),
                pl.BlockSpec((2, features), lambda i: (0, 0)),
            ],
            out_specs=pl.BlockSpec((tile_rows, features), lambda i: (i, 0)),
        ),
        compiler_params=pltpu.CompilerParams(
            # "parallel" lets the single grid axis be sharded across the two
            # TensorCores on v7x; harmless on single-TC v5e/v6e.
            dimension_semantics=("parallel",),
            vmem_limit_bytes=vmem_limit,
        ),
    )(x2, ab)

    return out.reshape(orig_shape)


def _reference(x, a_2, b_2, eps):
    f = x.shape[-1]
    mean = jnp.mean(x, axis=-1, keepdims=True)
    std = jnp.sqrt(jnp.sum((x - mean) ** 2, axis=-1, keepdims=True) / (f - 1))
    return a_2 * (x - mean) / (std + eps) + b_2


if __name__ == "__main__":
    key = jax.random.PRNGKey(0)
    eps = 1e-6

    # Shapes implied by the module (transformer activations): [batch, seq, hidden].
    B, S, F = 2, 8, 32
    x = jax.random.normal(key, (B, S, F), dtype=jnp.float32)
    a_2 = jnp.ones((F,), dtype=jnp.float32)
    b_2 = jnp.zeros((F,), dtype=jnp.float32)

    y = jax.block_until_ready(layer_norm(x, a_2, b_2, eps=eps))
    assert jnp.allclose(y, _reference(x, a_2, b_2, eps), atol=1e-5, rtol=1e-5), \
        "mismatch vs reference"

    # Ragged case: row count not a multiple of the tile -> exercises Pallas'
    # masking of the final partial block (no wrapper-side pad/slice anymore).
    x2 = jax.random.normal(jax.random.PRNGKey(1), (3, 5, F), dtype=jnp.float32)
    y2 = jax.block_until_ready(layer_norm(x2, a_2, b_2, eps=eps))
    assert jnp.allclose(y2, _reference(x2, a_2, b_2, eps), atol=1e-5, rtol=1e-5), \
        "mismatch vs reference (ragged rows)"

    print("KERNEL_OK")
</pallas_src>

<mosaic_0001>
module attributes {stable_mosaic.version = 11 : i64} {
  func.func @_layernorm_kernel(%arg0: i32, %arg1: memref<8x32xf32, #tpu.memory_space<vmem>>, %arg2: memref<2x32xf32, #tpu.memory_space<vmem>>, %arg3: memref<8x32xf32, #tpu.memory_space<vmem>>) attributes {dimension_semantics = [#tpu.dimension_semantics<parallel>], iteration_bounds = array<i64: 2>, scalar_prefetch = 0 : i64, scratch_operands = 0 : i64, tpu.core_type = #tpu.core_type<tc>, window_params = [{transform_indices = @transform_0, window_bounds = array<i64: 8, 32>}, {pipeline_mode = #tpu.pipeline_mode<synchronous>, transform_indices = @transform_1, window_bounds = array<i64: 2, 32>}, {transform_indices = @transform_2, window_bounds = array<i64: 8, 32>}]} {
    %c0 = arith.constant 0 : index
    %c0_0 = arith.constant 0 : index
    %0 = vector.load %arg1[%c0, %c0_0] : memref<8x32xf32, #tpu.memory_space<vmem>>, vector<8x32xf32>
    %c0_1 = arith.constant 0 : index
    %c0_2 = arith.constant 0 : index
    %1 = vector.load %arg2[%c0_1, %c0_2] : memref<2x32xf32, #tpu.memory_space<vmem>>, vector<2x32xf32>
    %2 = vector.extract_strided_slice %1 {offsets = [0, 0], sizes = [1, 32], strides = [1, 1]} : vector<2x32xf32> to vector<1x32xf32>
    %3 = vector.extract_strided_slice %1 {offsets = [1, 0], sizes = [1, 32], strides = [1, 1]} : vector<2x32xf32> to vector<1x32xf32>
    %cst = arith.constant dense<0.000000e+00> : vector<8xf32>
    %4 = vector.multi_reduction <add>, %0, %cst [1] : vector<8x32xf32> to vector<8xf32>
    %5 = vector.shape_cast %4 : vector<8xf32> to vector<8x1xf32>
    %cst_3 = arith.constant 3.125000e-02 : f32
    %6 = vector.broadcast %cst_3 : f32 to vector<8x1xf32>
    %7 = arith.mulf %5, %6 : vector<8x1xf32>
    %8 = vector.broadcast %7 : vector<8x1xf32> to vector<8x32xf32>
    %9 = arith.subf %0, %8 : vector<8x32xf32>
    %10 = arith.mulf %9, %9 : vector<8x32xf32>
    %cst_4 = arith.constant dense<0.000000e+00> : vector<8xf32>
    %11 = vector.multi_reduction <add>, %10, %cst_4 [1] : vector<8x32xf32> to vector<8xf32>
    %12 = vector.shape_cast %11 : vector<8xf32> to vector<8x1xf32>
    %cst_5 = arith.constant 0.0322580636 : f32
    %13 = vector.broadcast %cst_5 : f32 to vector<8x1xf32>
    %14 = arith.mulf %12, %13 : vector<8x1xf32>
    %15 = math.sqrt %14 : vector<8x1xf32>
    %cst_6 = arith.constant 9.99999997E-7 : f32
    %16 = vector.broadcast %cst_6 : f32 to vector<8x1xf32>
    %17 = arith.addf %15, %16 : vector<8x1xf32>
    %18 = tpu.reciprocal %17 : vector<8x1xf32> -> vector<8x1xf32>
    %19 = vector.broadcast %18 : vector<8x1xf32> to vector<8x32xf32>
    %20 = arith.mulf %9, %19 : vector<8x32xf32>
    %21 = vector.broadcast %2 : vector<1x32xf32> to vector<8x32xf32>
    %22 = arith.mulf %20, %21 : vector<8x32xf32>
    %23 = vector.broadcast %3 : vector<1x32xf32> to vector<8x32xf32>
    %24 = arith.addf %22, %23 : vector<8x32xf32>
    %c0_7 = arith.constant 0 : index
    %c0_8 = arith.constant 0 : index
    %25 = vector.load %arg3[%c0_7, %c0_8] : memref<8x32xf32, #tpu.memory_space<vmem>>, vector<8x32xf32>
    tpu.vector_store %arg3[%c0_7, %c0_8], %24 {strides = array<i32>} : memref<8x32xf32, #tpu.memory_space<vmem>>, vector<8x32xf32>,
    return
  }
  func.func @transform_0(%arg0: i32) -> (i32, i32) {
    %c0_i32 = arith.constant 0 : i32
    %c0_i32_0 = arith.constant 0 : i32
    return %arg0, %c0_i32 : i32, i32
  }
  func.func @transform_1(%arg0: i32) -> (i32, i32) {
    %c0_i32 = arith.constant 0 : i32
    %c0_i32_0 = arith.constant 0 : i32
    %c0_i32_1 = arith.constant 0 : i32
    return %c0_i32, %c0_i32_0 : i32, i32
  }
  func.func @transform_2(%arg0: i32) -> (i32, i32) {
    %c0_i32 = arith.constant 0 : i32
    %c0_i32_0 = arith.constant 0 : i32
    return %arg0, %c0_i32 : i32, i32
  }
}

</mosaic_0001>

<llo_original>
// kernel: tpu_custom_call.1
$region0: #{tpu_custom_call.1}
  #allocation0 [shape = 'u32[]', space=smem, size = 0x4, offset = 0x4, fixed_abs, tag = 'smem constant byte address 0x4 - core index']
  #allocation1 [shape = 'u32[144,128]{1,0:T(1,128)}', space=vmem, size = 0x12000, scoped, tag = 'internal scratch']
  %s0 = inlined_call_operand.hbm [shape: f32[16,32], index: 0, kind: input, shape index: {}]
  %s1 = inlined_call_operand.hbm [shape: f32[2,32], index: 1, kind: input, shape index: {}]
  %s2 = inlined_call_operand.hbm [shape: f32[16,32], index: 2, kind: output, shape index: {}]
  %s3 = sld [smem:[#allocation0]]
  $region49: #{tpu_custom_call.1} parent=0
    _
  %s5 = ssub.s32 1, %s3
  %s6 = scalar_select 0, %s5, %s3
  $region1: #{tpu_custom_call.1} parent=0
    #allocation2 [shape = 'u8[8192]{0}', space=vmem, size = 0x2000, scoped, tag = 'input window, operand 0']
    #allocation3 [shape = 's32[2]{0}', space=sflag, size = 0x8, scoped, tag = 'scoped memory for tpu_custom_call.1']
    #allocation4 [shape = 's32[2]{0}', space=sflag, size = 0x8, scoped, tag = 'scoped memory for tpu_custom_call.1']
    #allocation5 [shape = 'u8[1024]{0}', space=vmem, size = 0x400, scoped, tag = 'input window, operand 1, single buffered']
    #allocation6 [shape = 's32[1]{0}', space=sflag, size = 0x4, scoped, tag = 'scoped memory for tpu_custom_call.1']
    #allocation7 [shape = 'u8[8192]{0}', space=vmem, size = 0x2000, scoped, tag = 'output window, operand 0']
    %7 = vsyncpa [#allocation3], 0
    %s8 = scalar_lea.sflag [#allocation3], 1
    %9 = vsyncpa %s8, 0
    %10 = vsyncpa [#allocation6], 0
    %11 = vsyncpa [#allocation4], 0
    %s12 = scalar_lea.sflag [#allocation4], 1
    %13 = vsyncpa %s12, 0
    loop: start=0, step=1, limit=4
    $region2: #{tpu_custom_call.1} parent=1 // loop_pre_header
      _
    $region3: #{tpu_custom_call.1} parent=1 // loop_header
      %s15 = sphi 0, %s19
      %p16 = scmp.ge.s32.totalorder %s15, 4
      %s25 = sphi 0, %s27
      %s28 = sphi 0, %s25
      %s29 = sphi 0, %s28
      %s45 = sphi 0, %s29
      %s49 = sphi 0, %s49
      %s51 = sphi 0, %s49
      %s52 = sphi 0, %s51
      %s66 = sphi 0, %s52
      %s72 = sphi 0, %s74
      %s75 = sphi 0, %s72
      %s76 = sphi 0, %s75
      %s92 = sphi 0, %s76
    $region4: #{tpu_custom_call.1} parent=1 // loop_header_branch
      %18 = sbr.rel (%p16) target = $region8
    $region5: #{tpu_custom_call.1} parent=1 // loop_body
      %s20 = ssub.s32 %s15, 1
      %s21 = ssub.s32 %s15, 2
      %s22 = sadd.s32 %s15, 1
      %s23 = ssub.s32 %s15, %s22
      %p24 = scmp.eq.s32.totalorder %s23, 0
      %s26 = sadd.s32 %s25, 1
      %s27 = scalar_select %p24, %s25, %s26
      %p30 = pneg %p24
      %p31 = scmp.eq.s32.totalorder %s15, 1
      %p32 = por %p30, %p31
      %p33 = scmp.ne.s32.totalorder %s25, %s28
      %p34 = scmp.eq.s32.totalorder %s15, 0
      %p35 = por %p33, %p34
      %p36 = scmp.ne.s32.totalorder %s25, %s28
      %p37 = scmp.eq.s32.totalorder %s20, 1
      %p38 = por %p36, %p37
      %p39 = scmp.ne.s32.totalorder %s28, %s29
      %p40 = scmp.eq.s32.totalorder %s20, 0
      %p41 = por %p39, %p40
      %p42 = scmp.ne.s32.totalorder %s28, %s29
      %p43 = scmp.eq.s32.totalorder %s21, 1
      %p44 = por %p42, %p43
      %p46 = scmp.ne.s32.totalorder %s29, %s45
      %p47 = scmp.eq.s32.totalorder %s21, 0
      %p48 = por %p46, %p47
      %s50 = sadd.s32 %s49, 1
      %p53 = scmp.eq.s32.totalorder %s15, 1
      %p54 = scmp.ne.s32.totalorder %s49, %s51
      %p55 = scmp.eq.s32.totalorder %s15, 0
      %p56 = por %p54, %p55
      %p57 = scmp.ne.s32.totalorder %s49, %s51
      %p58 = scmp.eq.s32.totalorder %s20, 1
      %p59 = por %p57, %p58
      %p60 = scmp.ne.s32.totalorder %s51, %s52
      %p61 = scmp.eq.s32.totalorder %s20, 0
      %p62 = por %p60, %p61
      %p63 = scmp.ne.s32.totalorder %s51, %s52
      %p64 = scmp.eq.s32.totalorder %s21, 1
      %p65 = por %p63, %p64
      %p67 = scmp.ne.s32.totalorder %s52, %s66
      %p68 = scmp.eq.s32.totalorder %s21, 0
      %p69 = por %p67, %p68
      %s70 = ssub.s32 %s15, %s22
      %p71 = scmp.eq.s32.totalorder %s70, 0
      %s73 = sadd.s32 %s72, 1
      %s74 = scalar_select %p71, %s72, %s73
      %p77 = pneg %p71
      %p78 = scmp.eq.s32.totalorder %s15, 1
      %p79 = por %p77, %p78
      %p80 = scmp.ne.s32.totalorder %s72, %s75
      %p81 = scmp.eq.s32.totalorder %s15, 0
      %p82 = por %p80, %p81
      %p83 = scmp.ne.s32.totalorder %s72, %s75
      %p84 = scmp.eq.s32.totalorder %s20, 1
      %p85 = por %p83, %p84
      %p86 = scmp.ne.s32.totalorder %s75, %s76
      %p87 = scmp.eq.s32.totalorder %s20, 0
      %p88 = por %p86, %p87
      %p89 = scmp.ne.s32.totalorder %s75, %s76
      %p90 = scmp.eq.s32.totalorder %s21, 1
      %p91 = por %p89, %p90
      %p93 = scmp.ne.s32.totalorder %s76, %s92
      %p94 = scmp.eq.s32.totalorder %s21, 0
      %p95 = por %p93, %p94
      %p96 = scmp.le.s32.totalorder 1, %s15
      %p97 = scmp.lt.s32.totalorder %s15, 3
      %p98 = pnand %p96, %p97
      %p99 = pneg %p98
      // Predicated region
      $region9: #{tpu_custom_call.1} parent=5 // pred_check
        _
      $region10: #{tpu_custom_call.1} parent=5 // pred_check_branch
        %101 = sbr.rel (%p98) target = $region12
      $region11: #{tpu_custom_call.1} parent=5 // pred_region
        %s102 = ssub.s32 %s15, 1
        // Predicated region
        $region13: #{tpu_custom_call.1} parent=11 // pred_check
          %p103 = pneg %p62
        $region14: #{tpu_custom_call.1} parent=11 // pred_check_branch
          %105 = sbr.rel (%p103) target = $region16
        $region15: #{tpu_custom_call.1} parent=11 // pred_region
          %s107 = ssub.s32 32, 32
          %108 = vsyncadd [#allocation6], %s107
          %s110 = sshll.u32 [#allocation5], 4
          %s111 = int_to_ptr.vmem [resolvable:$true] %s110
          %113 = dma.hbm_to_vmem [thread:$0]  %s1, 32, %s111, [#allocation6]
        $region16: #{tpu_custom_call.1} parent=11 // pred_fallthru
          _
      $region12: #{tpu_custom_call.1} parent=5 // pred_fallthru
        _
      %p114 = scmp.lt.s32.totalorder %s15, 2
      // Predicated region
      $region17: #{tpu_custom_call.1} parent=5 // pred_check
        %p115 = pneg %p114
      $region18: #{tpu_custom_call.1} parent=5 // pred_check_branch
        %117 = sbr.rel (%p115) target = $region20
      $region19: #{tpu_custom_call.1} parent=5 // pred_region
        // Predicated region
        $region21: #{tpu_custom_call.1} parent=19 // pred_check
          %p118 = pneg %p35
        $region22: #{tpu_custom_call.1} parent=19 // pred_check_branch
          %120 = sbr.rel (%p118) target = $region24
        $region23: #{tpu_custom_call.1} parent=19 // pred_region
          %s121 = sand.u32 %s25, 1
          %s122 = scalar_lea.sflag [#allocation3], %s121
          %s123 = sand.u32 %s25, 1
          %s124 = smul.addr %s123, 8
          %s125 = scalar_lea.vmem [#allocation2], %s124
          %s127 = ssub.s32 128, 128
          %128 = vsyncadd %s122, %s127
          %s129 = smul.addr %s15, 128
          %s130 = scalar_lea.hbm %s0, %s129
          %s132 = sshll.u32 %s125, 4
          %s133 = int_to_ptr.vmem [resolvable:$true] %s132
          %135 = dma.hbm_to_vmem [thread:$0]  %s130, 128, %s133, %s122
        $region24: #{tpu_custom_call.1} parent=19 // pred_fallthru
          _
      $region20: #{tpu_custom_call.1} parent=5 // pred_fallthru
        _
      %p136 = scmp.le.s32.totalorder 1, %s15
      %p137 = scmp.lt.s32.totalorder %s15, 3
      %p138 = pnand %p136, %p137
      %p139 = pneg %p138
      // Predicated region
      $region25: #{tpu_custom_call.1} parent=5 // pred_check
        _
      $region26: #{tpu_custom_call.1} parent=5 // pred_check_branch
        %141 = sbr.rel (%p138) target = $region28
      $region27: #{tpu_custom_call.1} parent=5 // pred_region
        %s142 = ssub.s32 %s15, 1
        %s143 = sand.u32 %s28, 1
        %s144 = scalar_lea.sflag [#allocation3], %s143
        %s145 = sand.u32 %s28, 1
        %s146 = smul.addr %s145, 8
        %s147 = scalar_lea.vmem [#allocation2], %s146
        // Predicated region
        $region29: #{tpu_custom_call.1} parent=27 // pred_check
          %p148 = pneg %p41
        $region30: #{tpu_custom_call.1} parent=27 // pred_check_branch
          %150 = sbr.rel (%p148) target = $region32
        $region31: #{tpu_custom_call.1} parent=27 // pred_region
          %151 = dma.done %s144, 128
        $region32: #{tpu_custom_call.1} parent=27 // pred_fallthru
          _
        // Predicated region
        $region33: #{tpu_custom_call.1} parent=27 // pred_check
          %p152 = pneg %p62
        $region34: #{tpu_custom_call.1} parent=27 // pred_check_branch
          %154 = sbr.rel (%p152) target = $region36
        $region35: #{tpu_custom_call.1} parent=27 // pred_region
          %155 = dma.done [#allocation6], 32
        $region36: #{tpu_custom_call.1} parent=27 // pred_fallthru
          _
        %s156 = sand.u32 %s28, 1
        %s157 = scalar_lea.sflag [#allocation3], %s156
        %s158 = sand.u32 %s28, 1
        %s159 = smul.addr %s158, 8
        %s160 = scalar_lea.vmem [#allocation2], %s159
        %p161 = pneg %p41
        %p162 = pneg %p38
        %p163 = pneg %p62
        %p164 = pneg %p59
        %p165 = pneg %p88
        %p166 = pneg %p85
        %s167 = sand.u32 %s75, 1
        %s168 = scalar_lea.sflag [#allocation4], %s167
        %s169 = sand.u32 %s75, 1
        %s170 = smul.addr %s169, 8
        %s171 = scalar_lea.vmem [#allocation7], %s170
        %v172 = vld [vmem:[%s147] sm:$0xff]
        %v173 = vld [vmem:[#allocation5] sm:$0x3]
        %vm174 = vcmask 261120
        %v175 = vsel %vm174, %v172, 0.0
        %176 = vadd.xlane.f32.xlu0 %v175
        %v177 = vpop.xlane.xlu0 %176
        %v178 = vmul.f32 %v177, 0.03125
        %v179 = vsub.f32 %v172, %v178
        %v180 = vmul.f32 %v179, %v179
        %v181 = vsel %vm174, %v180, 0.0
        %182 = vadd.xlane.f32.xlu0 %v181
        %v183 = vpop.xlane.xlu0 %182
        %v184 = vmul.f32 %v183, 0.032258064
        %v185 = vrsqrt.pop %v184
        %v186 = vmul.f32 %v184, %v185
        %vm187 = vcmp.eq.f32.partialorder %v184, inf
        %v188 = vsel %vm187, %v184, %v186
        %vm189 = vcmp.eq.f32.partialorder %v184, 0.0
        %v190 = vand.u32 %v184, 2147483648
        %v191 = vsel %vm189, %v190, %v188
        %v192 = vadd.f32 %v191, 1e-06
        %v193 = vrcp.pop %v192
        %v194 = vmul.f32 %v179, %v193
        %v195 = vlaneseq
        %v196 = vshrl.u32 %v195, 7
        %v197 = vsub.s32 0, %v196
        %v198 = vrot.slane %v173, %v197
        %v199 = vmul.f32 %v194, %v198
        %v200 = vlaneseq
        %v201 = vshrl.u32 %v200, 7
        %v202 = vsub.s32 1, %v201
        %v203 = vrot.slane %v173, %v202
        %v204 = vadd.f32 %v199, %v203
        %205 = vst.msk [vmem:[%s171] sm:$0xff] %vm174, %v204
        %s206 = sand.u32 %s75, 1
        %s207 = scalar_lea.sflag [#allocation4], %s206
        %s208 = sand.u32 %s75, 1
        %s209 = smul.addr %s208, 8
        %s210 = scalar_lea.vmem [#allocation7], %s209
        // Predicated region
        $region37: #{tpu_custom_call.1} parent=27 // pred_check
          %p211 = pneg %p85
        $region38: #{tpu_custom_call.1} parent=27 // pred_check_branch
          %213 = sbr.rel (%p211) target = $region40
        $region39: #{tpu_custom_call.1} parent=27 // pred_region
          %s215 = ssub.s32 128, 128
          %216 = vsyncadd %s207, %s215
          %s217 = smul.addr %s20, 128
          %s218 = scalar_lea.hbm %s2, %s217
          %s220 = sshll.u32 %s210, 4
          %s221 = int_to_ptr.vmem [resolvable:$true] %s220
          %223 = dma.vmem_to_hbm [thread:$0]  %s221, 128, %s218, %s207
        $region40: #{tpu_custom_call.1} parent=27 // pred_fallthru
          _
      $region28: #{tpu_custom_call.1} parent=5 // pred_fallthru
        _
      %p224 = scmp.le.s32.totalorder 2, %s15
      // Predicated region
      $region41: #{tpu_custom_call.1} parent=5 // pred_check
        %p225 = pneg %p224
      $region42: #{tpu_custom_call.1} parent=5 // pred_check_branch
        %227 = sbr.rel (%p225) target = $region44
      $region43: #{tpu_custom_call.1} parent=5 // pred_region
        %s228 = ssub.s32 %s15, 2
        // Predicated region
        $region45: #{tpu_custom_call.1} parent=43 // pred_check
          %p229 = pneg %p91
        $region46: #{tpu_custom_call.1} parent=43 // pred_check_branch
          %231 = sbr.rel (%p229) target = $region48
        $region47: #{tpu_custom_call.1} parent=43 // pred_region
          %s232 = sand.u32 %s76, 1
          %s233 = scalar_lea.sflag [#allocation4], %s232
          %s234 = sand.u32 %s76, 1
          %s235 = smul.addr %s234, 8
          %s236 = scalar_lea.vmem [#allocation7], %s235
          %237 = dma.done %s233, 128
        $region48: #{tpu_custom_call.1} parent=43 // pred_fallthru
          _
      $region44: #{tpu_custom_call.1} parent=5 // pred_fallthru
        _
    $region6: #{tpu_custom_call.1} parent=1 // loop_footer
      %s19 = sadd.s32 1, %s15
    $region7: #{tpu_custom_call.1} parent=1 // loop_footer_branch
      %14 = sbr.rel target = $region3
    $region8: #{tpu_custom_call.1} parent=1 // loop_exit
      _
    %238 = vsyncpa [#allocation3], 1
    %s239 = scalar_lea.sflag [#allocation3], 1
    %240 = vsyncpa %s239, 1
    %241 = vsyncpa [#allocation6], 1
    %242 = vsyncpa [#allocation4], 1
    %s243 = scalar_lea.sflag [#allocation4], 1
    %244 = vsyncpa %s243, 1

</llo_original>
